<compile_context>
chip_gen: v6e
topology: v6e:2x2x1
jax: 0.10.0
libtpu: 0.0.40
codegen_flags: <defaults>
</compile_context>

<pallas_src>
import jax
import jax.numpy as jnp
from jax.experimental import pallas as pl
from jax.experimental.pallas import tpu as pltpu


_TILE_N_MAX = 1024   # rows per grid step (multiple of 8); ~2 MiB double-buffered VMEM
_LANES = 128         # lane width: output padded to a multiple of this
_SUBLANES = 8        # f32 sublane packing
_SMALL_C_MAX = 8     # at/below this contraction size, use the VPU outer product


def _round_up(x, m):
    return ((x + m - 1) // m) * m


def _make_kernel(c, use_mxu):
    if use_mxu:
        def kernel(x_ref, b_ref, o_ref):
            acc = jnp.dot(x_ref[...], b_ref[...],
                          preferred_element_type=jnp.float32)
            o_ref[...] = jnp.sin(acc).astype(o_ref.dtype)
    else:
        # K = C is tiny (e.g. 3): unrolled VPU outer-product accumulation.
        # 3 vmul + 2 vadd per output vreg -- far under the 4-VALU budget, and
        # keeps the MXU / result-FIFO off the critical path.
        def kernel(x_ref, b_ref, o_ref):
            x = x_ref[...].astype(jnp.float32)   # [tile_n, C]
            b = b_ref[...].astype(jnp.float32)   # [C, M_pad]
            acc = x[:, 0:1] * b[0:1, :]
            for k in range(1, c):                # unrolled at trace time
                acc = acc + x[:, k:k + 1] * b[k:k + 1, :]
            o_ref[...] = jnp.sin(acc).astype(o_ref.dtype)
    return kernel


def gaussian_fourier_feature_transform(x, B, *, tile_n_max=_TILE_N_MAX):
    """y = sin(x @ B). x: [1, N, C] or [N, C]; B: [C, M]. Returns [N, M]."""
    if x.ndim == 3:
        assert x.shape[0] == 1, "expected leading batch dim of 1 (squeeze(0))"
        x = x[0]
    assert x.ndim == 2, f"Expected 2D input (got {x.ndim}D input)"
    N, C = x.shape
    C2, M = B.shape
    assert C == C2

    out_dtype = x.dtype

    # Sublane-align rows; lane-align the output width (lane-dense out_spec).
    n_pad = _round_up(N, _SUBLANES)
    m_pad = _round_up(M, _LANES)
    if n_pad != N:
        x = jnp.pad(x, ((0, n_pad - N), (0, 0)))
    if m_pad != M:
        B = jnp.pad(B, ((0, 0), (0, m_pad - M)))

    tile_n = min(_round_up(tile_n_max, _SUBLANES), n_pad)
    grid = (pl.cdiv(n_pad, tile_n),)

    kernel = _make_kernel(C, use_mxu=(C > _SMALL_C_MAX))

    out = pl.pallas_call(
        kernel,
        out_shape=jax.ShapeDtypeStruct((n_pad, m_pad), out_dtype),
        grid=grid,
        in_specs=[
            pl.BlockSpec((tile_n, C), lambda i: (i, 0)),    # x streamed over N
            pl.BlockSpec((C, m_pad), lambda i: (0, 0)),     # B resident in VMEM
        ],
        out_specs=pl.BlockSpec((tile_n, m_pad), lambda i: (i, 0)),
        compiler_params=pltpu.CompilerParams(
            dimension_semantics=("parallel",),   # shard N-tiles across TCs (v7x)
            vmem_limit_bytes=32 * 1024 * 1024,
        ),
    )(x, B)

    return out[:N, :M]


if __name__ == "__main__":
    key = jax.random.PRNGKey(0)
    k_x, k_b, k_x2 = jax.random.split(key, 3)

    num_input_channels = 3
    mapping_size = 93
    scale = 25.0

    # Deterministic parameter init (mirrors nn.Parameter(torch.randn(C, M) * scale)).
    B = jax.random.normal(
        k_b, (num_input_channels, mapping_size), dtype=jnp.float32) * scale

    # Small shape matching the module's forward: [1, N, C] -> squeeze(0).
    N = 8
    x = jax.random.normal(k_x, (1, N, num_input_channels), dtype=jnp.float32)
    y = jax.block_until_ready(gaussian_fourier_feature_transform(x, B))
    ref = jnp.sin(x[0] @ B)
    assert y.shape == (N, mapping_size)
    assert jnp.allclose(y, ref, atol=2e-4, rtol=2e-4), "mismatch vs reference (small N)"

    # Larger, non-aligned N exercises the multi-tile / partial-block path.
    N2 = 1100
    x2 = jax.random.normal(k_x2, (1, N2, num_input_channels), dtype=jnp.float32)
    y2 = jax.block_until_ready(gaussian_fourier_feature_transform(x2, B))
    ref2 = jnp.sin(x2[0] @ B)
    assert y2.shape == (N2, mapping_size)
    assert jnp.allclose(y2, ref2, atol=2e-4, rtol=2e-4), "mismatch vs reference (tiled N)"

    print("KERNEL_OK")
</pallas_src>

<mosaic_0001>
module attributes {stable_mosaic.version = 11 : i64} {
  func.func @kernel(%arg0: i32, %arg1: memref<8x3xf32, #tpu.memory_space<vmem>>, %arg2: memref<3x128xf32, #tpu.memory_space<vmem>>, %arg3: memref<8x128xf32, #tpu.memory_space<vmem>>) attributes {dimension_semantics = [#tpu.dimension_semantics<parallel>], iteration_bounds = array<i64: 1>, scalar_prefetch = 0 : i64, scratch_operands = 0 : i64, tpu.core_type = #tpu.core_type<tc>, window_params = [{transform_indices = @transform_0, window_bounds = array<i64: 8, 3>}, {pipeline_mode = #tpu.pipeline_mode<synchronous>, transform_indices = @transform_1, window_bounds = array<i64: 3, 128>}, {transform_indices = @transform_2, window_bounds = array<i64: 8, 128>}]} {
    %c0 = arith.constant 0 : index
    %c0_0 = arith.constant 0 : index
    %0 = vector.load %arg1[%c0, %c0_0] : memref<8x3xf32, #tpu.memory_space<vmem>>, vector<8x3xf32>
    %c0_1 = arith.constant 0 : index
    %c0_2 = arith.constant 0 : index
    %1 = vector.load %arg2[%c0_1, %c0_2] : memref<3x128xf32, #tpu.memory_space<vmem>>, vector<3x128xf32>
    %2 = vector.extract_strided_slice %0 {offsets = [0, 0], sizes = [8, 1], strides = [1, 1]} : vector<8x3xf32> to vector<8x1xf32>
    %3 = vector.extract_strided_slice %1 {offsets = [0, 0], sizes = [1, 128], strides = [1, 1]} : vector<3x128xf32> to vector<1x128xf32>
    %4 = vector.broadcast %2 : vector<8x1xf32> to vector<8x128xf32>
    %5 = vector.broadcast %3 : vector<1x128xf32> to vector<8x128xf32>
    %6 = arith.mulf %4, %5 : vector<8x128xf32>
    %7 = vector.extract_strided_slice %0 {offsets = [0, 1], sizes = [8, 1], strides = [1, 1]} : vector<8x3xf32> to vector<8x1xf32>
    %8 = vector.extract_strided_slice %1 {offsets = [1, 0], sizes = [1, 128], strides = [1, 1]} : vector<3x128xf32> to vector<1x128xf32>
    %9 = vector.broadcast %7 : vector<8x1xf32> to vector<8x128xf32>
    %10 = vector.broadcast %8 : vector<1x128xf32> to vector<8x128xf32>
    %11 = arith.mulf %9, %10 : vector<8x128xf32>
    %12 = arith.addf %6, %11 : vector<8x128xf32>
    %13 = vector.extract_strided_slice %0 {offsets = [0, 2], sizes = [8, 1], strides = [1, 1]} : vector<8x3xf32> to vector<8x1xf32>
    %14 = vector.extract_strided_slice %1 {offsets = [2, 0], sizes = [1, 128], strides = [1, 1]} : vector<3x128xf32> to vector<1x128xf32>
    %15 = vector.broadcast %13 : vector<8x1xf32> to vector<8x128xf32>
    %16 = vector.broadcast %14 : vector<1x128xf32> to vector<8x128xf32>
    %17 = arith.mulf %15, %16 : vector<8x128xf32>
    %18 = arith.addf %12, %17 : vector<8x128xf32>
    %19 = math.sin %18 : vector<8x128xf32>
    %c0_3 = arith.constant 0 : index
    %c0_4 = arith.constant 0 : index
    %20 = vector.load %arg3[%c0_3, %c0_4] : memref<8x128xf32, #tpu.memory_space<vmem>>, vector<8x128xf32>
    tpu.vector_store %arg3[%c0_3, %c0_4], %19 {strides = array<i32>} : memref<8x128xf32, #tpu.memory_space<vmem>>, vector<8x128xf32>,
    return
  }
  func.func @transform_0(%arg0: i32) -> (i32, i32) {
    %c0_i32 = arith.constant 0 : i32
    %c0_i32_0 = arith.constant 0 : i32
    return %arg0, %c0_i32 : i32, i32
  }
  func.func @transform_1(%arg0: i32) -> (i32, i32) {
    %c0_i32 = arith.constant 0 : i32
    %c0_i32_0 = arith.constant 0 : i32
    %c0_i32_1 = arith.constant 0 : i32
    return %c0_i32, %c0_i32_0 : i32, i32
  }
  func.func @transform_2(%arg0: i32) -> (i32, i32) {
    %c0_i32 = arith.constant 0 : i32
    %c0_i32_0 = arith.constant 0 : i32
    return %arg0, %c0_i32 : i32, i32
  }
}

</mosaic_0001>

<llo_original>
// kernel: tpu_custom_call.1
$region0: #{tpu_custom_call.1}
  #allocation0 [shape = 'u32[]', space=smem, size = 0x4, offset = 0x4, fixed_abs, tag = 'smem constant byte address 0x4 - core index']
  #allocation1 [shape = 'u32[144,128]{1,0:T(1,128)}', space=vmem, size = 0x12000, scoped, tag = 'internal scratch']
  %s0 = inlined_call_operand.vmem [shape: f32[8,3], index: 0, kind: input, shape index: {}]
  %s1 = inlined_call_operand.vmem [shape: f32[3,128], index: 1, kind: input, shape index: {}]
  %s2 = inlined_call_operand.hbm [shape: f32[8,128], index: 2, kind: output, shape index: {}]
  %s3 = sld [smem:[#allocation0]]
  $region18: #{tpu_custom_call.1} parent=0
    _
  %s5 = ssub.s32 1, %s3
  %s6 = scalar_select 0, %s5, %s3
  $region1: #{tpu_custom_call.1} parent=0
    #allocation2 [shape = 'u8[4096]{0}', space=vmem, size = 0x1000, scoped, tag = 'output window, operand 0, single buffered']
    #allocation3 [shape = 's32[1]{0}', space=sflag, size = 0x4, scoped, tag = 'scoped memory for tpu_custom_call.1']
    %7 = vsyncpa [#allocation3], 0
    // Predicated region
    $region2: #{tpu_custom_call.1} parent=1 // pred_check
      _
    $region3: #{tpu_custom_call.1} parent=1 // pred_check_branch
      %9 = sbr.rel (0) target = $region5
    $region4: #{tpu_custom_call.1} parent=1 // pred_region
      _
    $region5: #{tpu_custom_call.1} parent=1 // pred_fallthru
      _
    // Predicated region
    $region6: #{tpu_custom_call.1} parent=1 // pred_check
      _
    $region7: #{tpu_custom_call.1} parent=1 // pred_check_branch
      %11 = sbr.rel (0) target = $region9
    $region8: #{tpu_custom_call.1} parent=1 // pred_region
      _
    $region9: #{tpu_custom_call.1} parent=1 // pred_fallthru
      _
    %v12 = vld [vmem:[%s0] sm:$0xff]
    %v13 = vld [vmem:[%s1] sm:$0x7]
    %15 = vset.pattern.permute.xlu0 0
    %16 = vperm.xlu0 %15, %v12
    %v17 = vpop.permute.xlu0 %16
    %v19 = vlaneseq
    %v20 = vshrl.u32 %v19, 7
    %v21 = vsub.s32 0, %v20
    %v22 = vrot.slane %v13, %v21
    %v23 = vmul.f32 %v17, %v22
    %24 = vset.pattern.permute.xlu0 1
    %25 = vperm.xlu0 %24, %v12
    %v26 = vpop.permute.xlu0 %25
    %v28 = vlaneseq
    %v29 = vshrl.u32 %v28, 7
    %v30 = vsub.s32 1, %v29
    %v31 = vrot.slane %v13, %v30
    %v32 = vmul.f32 %v26, %v31
    %v33 = vadd.f32 %v23, %v32
    %34 = vset.pattern.permute.xlu0 2
    %35 = vperm.xlu0 %34, %v12
    %v36 = vpop.permute.xlu0 %35
    %v38 = vlaneseq
    %v39 = vshrl.u32 %v38, 7
    %v40 = vsub.s32 2, %v39
    %v41 = vrot.slane %v13, %v40
    %v42 = vmul.f32 %v36, %v41
    %v43 = vadd.f32 %v33, %v42
    %v44 = vand.u32 2147483647, %v43
    %vm45 = vcmp.le.f32.partialorder %v44, 0.7853982
    %vm46 = vcmp.lt.s32.totalorder %v43, 0
    %v47 = vand.u32 %v43, 2139095040
    %v48 = vshrl.u32 %v47, 23
    %v49 = vsub.s32 %v48, 127
    %v50 = vand.u32 2147483647, %v43
    %v51 = vand.u32 %v50, 8388607
    %v52 = vor.u32 %v51, 8388608
    %v53 = vsub.s32 0, %v52
    %v54 = vadd.s32 %v49, 1
    %vm55 = vcmp.gt.s32.totalorder %v54, 0
    %v56 = vsel %vm55, %v54, 0
    %v57 = vshrl.u32 %v56, 5
    %v58 = vand.u32 %v56, 31
    %v59 = vsub.s32 32, %v58
    %v60 = vshrl.u32 683565275, %v59
    %v61 = vshll.u32 683565275, %v58
    %v62 = vshrl.u32 2475754826, %v59
    %v63 = vor.u32 %v61, %v62
    %v64 = vshll.u32 2475754826, %v58
    %v65 = vshrl.u32 2131351028, %v59
    %v66 = vor.u32 %v64, %v65
    %v67 = vshll.u32 2131351028, %v58
    %v68 = vshrl.u32 2102212464, %v59
    %v69 = vor.u32 %v67, %v68
    %v70 = vshll.u32 2102212464, %v58
    %v71 = vshrl.u32 920167782, %v59
    %v72 = vor.u32 %v70, %v71
    %v73 = vshll.u32 920167782, %v58
    %v74 = vshrl.u32 1326507024, %v59
    %v75 = vor.u32 %v73, %v74
    %vm76 = vcmp.lt.s32.totalorder %v57, 1
    %vm77 = vcmp.lt.s32.totalorder %v57, 2
    %vm78 = vcmp.lt.s32.totalorder %v57, 3
    %vm79 = vcmp.lt.s32.totalorder %v57, 4
    %v80 = vsel %vm76, %v60, %v63
    %v81 = vsel %vm79, %v69, 2102212464
    %v82 = vsel %vm78, %v66, %v81
    %v83 = vsel %vm77, %v80, %v82
    %v84 = vsel %vm76, %v63, %v66
    %v85 = vsel %vm79, %v72, 920167782
    %v86 = vsel %vm78, %v69, %v85
    %v87 = vsel %vm77, %v84, %v86
    %v88 = vsel %vm76, %v66, %v69
    %v89 = vsel %vm79, %v75, 1326507024
    %v90 = vsel %vm78, %v72, %v89
    %v91 = vsel %vm77, %v88, %v90
    %v92 = vshll.u32 %v52, 8
    %v93 = vmul.u32.u64.compose %v92, %v91
    %v94 = vextract.low.u32 %v93
    %v95 = vextract.high.u32 %v93
    %v96 = vmul.u32.u64.compose %v92, %v87
    %v97 = vextract.low.u32 %v96
    %v98 = vextract.high.u32 %v96
    %v99 = vmul.u32 %v92, %v83
    %v100 = vadd.s32 %v95, %v97
    %vm101 = vc.u32 %v95, %v97
    %v102 = vadd.s32 %v98, 1
    %v103 = vsel %vm101, %v102, %v98
    %v104 = vadd.s32 %v99, %v103
    %v105 = vadd.s32 %v104, 536870912
    %v106 = vshrl.u32 %v105, 30
    %v107 = vshll.u32 %v106, 30
    %v108 = vsub.s32 %v104, %v107
    %vm109 = vcmp.lt.s32.totalorder %v108, 0
    %v110 = vsub.s32 0, %v108
    %v111 = vsel %vm109, %v110, %v108
    %v112 = vclz %v111
    %v113 = vsub.s32 %v112, 2
    %vm114 = vcmp.gt.s32.totalorder 0, %v113
    %v115 = vsel %vm114, 0, %v113
    %v116 = vsub.s32 32, %v115
    %v117 = vshll.u32 %v108, %v115
    %v118 = vshrl.u32 %v100, %v116
    %v119 = vor.u32 %v117, %v118
    %v120 = vsub.s32 4294967266, %v115
    %v121 = vadd.s32 %v120, 127
    %v122 = vshll.u32 %v121, 23
    %v123 = vor.u32 4788187, %v122
    %v124 = vand.u32 2147483647, %v123
    %v126 = vcvt.s32.f32 %v119
    %v127 = vmul.f32 %v126, %v124
    %v128 = vxor.u32 %v127, 2147483648
    %v129 = vsel %vm46, %v128, %v127
    %v130 = vsub.s32 4, %v106
    %v131 = vsel %vm46, %v130, %v106
    %v132 = vsel %vm45, %v43, %v129
    %v133 = vsel %vm45, 0, %v131
    %v134 = vcosq.f32.pop %v132
    %v135 = vsinq.f32.pop %v132
    %vm136 = vweird.f32 %v43
    %v137 = vadd.s32 %v133, 3
    %v138 = vand.u32 %v137, 3
    %vm139 = vcmp.lt.s32.totalorder %v138, 2
    %vm140 = vcmp.eq.s32.totalorder %v138, 0
    %v141 = vxor.u32 %v135, 2147483648
    %v142 = vsel %vm140, %v134, %v141
    %vm143 = vcmp.eq.s32.totalorder %v138, 2
    %v144 = vxor.u32 %v134, 2147483648
    %v145 = vsel %vm143, %v144, %v135
    %v146 = vsel %vm139, %v142, %v145
    %v147 = vsel %vm136, nan, %v146
    %148 = vst [vmem:[#allocation2] sm:$0xff] %v147
    // Predicated region
    $region10: #{tpu_custom_call.1} parent=1 // pred_check
      _
    $region11: #{tpu_custom_call.1} parent=1 // pred_check_branch
      %150 = sbr.rel (0) target = $region13
    $region12: #{tpu_custom_call.1} parent=1 // pred_region
      %s152 = ssub.s32 128, 128
      %153 = vsyncadd [#allocation3], %s152
      %s155 = sshll.u32 [#allocation2], 4
      %s156 = int_to_ptr.vmem [resolvable:$true] %s155
      %158 = dma.vmem_to_hbm [thread:$0]  %s156, 128, %s2, [#allocation3]
    $region13: #{tpu_custom_call.1} parent=1 // pred_fallthru
      _
    // Predicated region
    $region14: #{tpu_custom_call.1} parent=1 // pred_check
      _
    $region15: #{tpu_custom_call.1} parent=1 // pred_check_branch
      %160 = sbr.rel (0) target = $region17
    $region16: #{tpu_custom_call.1} parent=1 // pred_region
      %161 = dma.done [#allocation3], 128
    $region17: #{tpu_custom_call.1} parent=1 // pred_fallthru
      _
    %162 = vsyncpa [#allocation3], 1

</llo_original>
